<compile_context>
chip_gen: v7x
topology: tpu7x:2x2x1
jax: 0.10.0
libtpu: 0.0.40
codegen_flags: <defaults>
</compile_context>

<pallas_src>
import functools

import jax
import jax.numpy as jnp
from jax import lax
from jax.experimental import pallas as pl
from jax.experimental.pallas import tpu as pltpu


def rise_kernel(cls_ref, masks_ref, weff_ref, b_ref, sal_ref, *, n_total, p1):
    """One grid step: a block of masks -> logits -> softmax[:, cls] -> sal accum.

    Grid is (num_cores, steps).  The leading axis is "parallel" (megacore split
    on v7x; plain serial elsewhere); the trailing axis accumulates mask blocks
    into the per-core sal row, which stays resident in VMEM.
    """
    step = pl.program_id(1)

    @pl.when(step == 0)
    def _():
        sal_ref[...] = jnp.zeros_like(sal_ref)

    masks = masks_ref[...]                          # (Bn, P) bf16 (HBM stream)

    # model(masks * x) == masks @ W_eff + b   (W_eff folded in the wrapper)
    logits = jnp.dot(masks, weff_ref[...], preferred_element_type=jnp.float32)
    logits = logits + b_ref[...]                    # (Bn, Kp); padded lanes -1e30

    # softmax(logits)[:, cls] without materializing full probs.
    m = jnp.max(logits, axis=-1, keepdims=True)
    e = jnp.exp(logits - m)
    denom = jnp.sum(e, axis=-1, keepdims=True)
    cls = cls_ref[0]
    kidx = lax.broadcasted_iota(jnp.int32, e.shape, 1)
    num = jnp.sum(jnp.where(kidx == cls, e, 0.0), axis=-1, keepdims=True)
    prob = num * pl.reciprocal(denom, approx=True)  # (Bn, 1) f32, EUP recip

    # sal += prob^T @ masks : Bn-axis reduction on the MXU, result is (1, P).
    contrib = lax.dot_general(
        prob.astype(masks.dtype), masks,
        dimension_numbers=(((0,), (0,)), ((), ())),
        preferred_element_type=jnp.float32)         # (1, P) f32
    sal_ref[...] += contrib.reshape(sal_ref.shape)

    @pl.when(step == pl.num_programs(1) - 1)
    def _():
        sal_ref[...] = sal_ref[...] * (1.0 / (n_total * p1))


def rise_forward(x, masks, w, b, *, p1, gpu_batch, num_cores=2):
    """x: (1, C, H, W) NCHW, masks: (N, 1, H, W), w: (C, H*W, K), b: (1, K)."""
    B, C, H, W = x.shape
    assert B == 1, "RISE explains a single image"
    N = masks.shape[0]
    P = H * W
    K = w.shape[-1]
    assert N % (num_cores * gpu_batch) == 0
    steps = N // (num_cores * gpu_batch)

    x2 = x[0].reshape(C, P).astype(jnp.float32)
    masks2 = masks.reshape(N, P)

    # Fold the channel loop into one effective weight (valid because the model
    # is linear):  sum_c (masks * x[c]) @ w[c]  ==  masks @ (sum_c x[c][:,None] * w[c])
    w_eff = jnp.einsum('cp,cpk->pk', x2, w.astype(jnp.float32))     # (P, K) f32

    # class_idx = argmax(model(x))  -- single unmasked forward, done as glue.
    logits0 = jnp.sum(w_eff, axis=0) + b[0]
    class_idx = jnp.argmax(logits0).astype(jnp.int32).reshape(1)

    # Pad the class axis to a lane-dense multiple of 128; padded logits get a
    # huge negative bias so softmax normalization is unchanged.
    Kp = max(128, ((K + 127) // 128) * 128)
    w_eff_p = jnp.zeros((P, Kp), jnp.float32).at[:, :K].set(w_eff)
    b_p = jnp.full((1, Kp), -1e30, jnp.float32).at[:, :K].set(
        b[0].astype(jnp.float32))

    # bf16 for the streamed O(N*P) masks and the resident weight; f32 accum.
    masks_bf = masks2.astype(jnp.bfloat16)
    w_eff_bf = w_eff_p.astype(jnp.bfloat16)

    kernel = functools.partial(rise_kernel, n_total=N, p1=p1)

    # NOTE(v7x): at ImageNet scale (P=224^2, K>=1000) W_eff must also be tiled
    # along K (extra grid axis) and Bn capped so 2*Bn*P*2 + P*Ktile*2 fits the
    # 64 MiB VMEM; not needed at these toy shapes.
    sal_parts = pl.pallas_call(
        kernel,
        out_shape=jax.ShapeDtypeStruct((num_cores, 1, P), jnp.float32),
        grid_spec=pltpu.PrefetchScalarGridSpec(
            num_scalar_prefetch=1,                    # class_idx lives in SMEM
            grid=(num_cores, steps),
            in_specs=[
                pl.BlockSpec((gpu_batch, P),
                             lambda c, s, cls: (c * steps + s, 0)),   # masks
                pl.BlockSpec((P, Kp), lambda c, s, cls: (0, 0)),      # W_eff
                pl.BlockSpec((1, Kp), lambda c, s, cls: (0, 0)),      # bias
            ],
            out_specs=pl.BlockSpec((1, 1, P),
                                   lambda c, s, cls: (c, 0, 0)),      # per-core sal
        ),
        compiler_params=pltpu.CompilerParams(
            dimension_semantics=("parallel", "arbitrary")),
    )(class_idx, masks_bf, w_eff_bf, b_p)

    # Reduce the per-core partial saliency rows outside the kernel.
    return jnp.sum(sal_parts[:, 0, :], axis=0).reshape(H, W)


def rise_reference(x, masks, w, b, *, p1):
    """Pure-JAX f32 reference mirroring the PyTorch forward."""
    _, C, H, W = x.shape
    N = masks.shape[0]
    P = H * W
    x2 = x[0].reshape(C, P)
    m2 = masks.reshape(N, P)
    logits0 = jnp.einsum('cp,cpk->k', x2, w) + b[0]
    cls = jnp.argmax(logits0)
    masked = m2[:, None, :] * x2[None, :, :]                 # (N, C, P)
    logits = jnp.einsum('ncp,cpk->nk', masked, w) + b        # (N, K)
    prob = jax.nn.softmax(logits, axis=1)[:, cls]            # (N,)
    sal = jnp.sum(prob[:, None] * m2, axis=0) / (N * p1)
    return sal.reshape(H, W)


if __name__ == "__main__":
    # Small, deterministic setup.
    C, H, W = 4, 16, 16
    K = 8                                  # synthetic classifier classes
    N, gpu_batch, num_cores = 256, 128, 2  # N masks, MXU-sized blocks
    p1 = 0.5

    key = jax.random.PRNGKey(0)
    kx, km, kw, kb = jax.random.split(key, 4)

    x = jax.random.normal(kx, (1, C, H, W), dtype=jnp.float32)
    masks = jax.random.uniform(km, (N, 1, H, W), dtype=jnp.float32)
    w = jax.random.normal(kw, (C, H * W, K), dtype=jnp.float32) * 0.02
    b = jax.random.normal(kb, (1, K), dtype=jnp.float32) * 0.1

    sal = rise_forward(x, masks, w, b, p1=p1, gpu_batch=gpu_batch,
                       num_cores=num_cores)
    sal = jax.block_until_ready(sal)

    sal_ref = rise_reference(x, masks, w, b, p1=p1)
    assert sal.shape == (H, W)
    err = jnp.max(jnp.abs(sal - sal_ref))
    # bf16 masks/weights + approx reciprocal -> looser (but still tight) tol.
    assert jnp.allclose(sal, sal_ref, atol=5e-3, rtol=5e-2), f"max abs err {err}"

    print("KERNEL_OK")
</pallas_src>

<mosaic_0001>
module attributes {stable_mosaic.version = 11 : i64} {
  func.func @rise_kernel(%arg0: i32, %arg1: i32, %arg2: memref<1xi32, #tpu.memory_space<smem>>, %arg3: memref<128x256xbf16, #tpu.memory_space<vmem>>, %arg4: memref<256x128xbf16, #tpu.memory_space<vmem>>, %arg5: memref<1x128xf32, #tpu.memory_space<vmem>>, %arg6: memref<1x1x256xf32, #tpu.memory_space<vmem>>) attributes {dimension_semantics = [#tpu.dimension_semantics<parallel>, #tpu.dimension_semantics<arbitrary>], iteration_bounds = array<i64: 2, 1>, scalar_prefetch = 1 : i64, scratch_operands = 0 : i64, tpu.core_type = #tpu.core_type<tc>, window_params = [{transform_indices = @transform_0, window_bounds = array<i64: 128, 256>}, {pipeline_mode = #tpu.pipeline_mode<synchronous>, transform_indices = @transform_1, window_bounds = array<i64: 256, 128>}, {pipeline_mode = #tpu.pipeline_mode<synchronous>, transform_indices = @transform_2, window_bounds = array<i64: 1, 128>}, {transform_indices = @transform_3, window_bounds = array<i64: 1, 1, 256>}]} {
    %c0_i32 = arith.constant 0 : i32
    %0 = arith.cmpi eq, %arg1, %c0_i32 : i32
    %1 = arith.extui %0 : i1 to i32
    %c0_i32_0 = arith.constant 0 : i32
    %2 = arith.cmpi ne, %1, %c0_i32_0 : i32
    scf.if %2 {
      %cst_20 = arith.constant 0.000000e+00 : f32
      %35 = vector.broadcast %cst_20 : f32 to vector<1x1x256xf32>
      %c0_21 = arith.constant 0 : index
      %c0_22 = arith.constant 0 : index
      %c0_23 = arith.constant 0 : index
      %36 = vector.load %arg6[%c0_21, %c0_22, %c0_23] : memref<1x1x256xf32, #tpu.memory_space<vmem>>, vector<1x1x256xf32>
      tpu.vector_store %arg6[%c0_21, %c0_22, %c0_23], %35 {strides = array<i32>} : memref<1x1x256xf32, #tpu.memory_space<vmem>>, vector<1x1x256xf32>,
    } else {
    }
    %c0 = arith.constant 0 : index
    %c0_1 = arith.constant 0 : index
    %3 = vector.load %arg3[%c0, %c0_1] : memref<128x256xbf16, #tpu.memory_space<vmem>>, vector<128x256xbf16>
    %c0_2 = arith.constant 0 : index
    %c0_3 = arith.constant 0 : index
    %4 = vector.load %arg4[%c0_2, %c0_3] : memref<256x128xbf16, #tpu.memory_space<vmem>>, vector<256x128xbf16>
    %cst = arith.constant dense<0.000000e+00> : vector<128x128xf32>
    %5 = tpu.matmul %3, %4, %cst {dimension_numbers = #tpu.dot_dimension_numbers<[1], [0], [0], [1], [0, 0, 1, 1], [], []>} : vector<128x256xbf16>, vector<256x128xbf16>, vector<128x128xf32> -> vector<128x128xf32>
    %c0_4 = arith.constant 0 : index
    %c0_5 = arith.constant 0 : index
    %6 = vector.load %arg5[%c0_4, %c0_5] : memref<1x128xf32, #tpu.memory_space<vmem>>, vector<1x128xf32>
    %7 = vector.broadcast %6 : vector<1x128xf32> to vector<128x128xf32>
    %8 = arith.addf %5, %7 : vector<128x128xf32>
    %cst_6 = arith.constant dense<0xFF800000> : vector<128xf32>
    %9 = vector.multi_reduction <maximumf>, %8, %cst_6 [1] : vector<128x128xf32> to vector<128xf32>
    %10 = vector.shape_cast %9 : vector<128xf32> to vector<128x1xf32>
    %11 = vector.broadcast %10 : vector<128x1xf32> to vector<128x128xf32>
    %12 = arith.subf %8, %11 : vector<128x128xf32>
    %13 = math.exp %12 : vector<128x128xf32>
    %cst_7 = arith.constant dense<0.000000e+00> : vector<128xf32>
    %14 = vector.multi_reduction <add>, %13, %cst_7 [1] : vector<128x128xf32> to vector<128xf32>
    %15 = vector.shape_cast %14 : vector<128xf32> to vector<128x1xf32>
    %c0_8 = arith.constant 0 : index
    %16 = memref.load %arg2[%c0_8] : memref<1xi32, #tpu.memory_space<smem>>
    %17 = tpu.iota {dimensions = array<i32: 1>} : vector<128x128xi32>
    %18 = vector.broadcast %16 : i32 to vector<128x128xi32>
    %19 = arith.cmpi eq, %17, %18 : vector<128x128xi32>
    %cst_9 = arith.constant 0.000000e+00 : f32
    %20 = vector.broadcast %cst_9 : f32 to vector<128x128xf32>
    %21 = arith.select %19, %13, %20 : vector<128x128xi1>, vector<128x128xf32>
    %cst_10 = arith.constant dense<0.000000e+00> : vector<128xf32>
    %22 = vector.multi_reduction <add>, %21, %cst_10 [1] : vector<128x128xf32> to vector<128xf32>
    %23 = vector.shape_cast %22 : vector<128xf32> to vector<128x1xf32>
    %24 = tpu.reciprocal %15 {approx = true} : vector<128x1xf32> -> vector<128x1xf32>
    %25 = arith.mulf %23, %24 : vector<128x1xf32>
    %26 = arith.truncf %25 : vector<128x1xf32> to vector<128x1xbf16>
    %cst_11 = arith.constant dense<0.000000e+00> : vector<1x256xf32>
    %27 = tpu.matmul %26, %3, %cst_11 {dimension_numbers = #tpu.dot_dimension_numbers<[0], [0], [1], [1], [0, 1, 1, 1], [], []>} : vector<128x1xbf16>, vector<128x256xbf16>, vector<1x256xf32> -> vector<1x256xf32>
    %c0_12 = arith.constant 0 : index
    %c0_13 = arith.constant 0 : index
    %c0_14 = arith.constant 0 : index
    %28 = vector.load %arg6[%c0_12, %c0_13, %c0_14] : memref<1x1x256xf32, #tpu.memory_space<vmem>>, vector<1x1x256xf32>
    %29 = vector.shape_cast %27 : vector<1x256xf32> to vector<1x1x256xf32>
    %30 = arith.addf %28, %29 : vector<1x1x256xf32>
    %c0_15 = arith.constant 0 : index
    %c0_16 = arith.constant 0 : index
    %c0_17 = arith.constant 0 : index
    %31 = vector.load %arg6[%c0_15, %c0_16, %c0_17] : memref<1x1x256xf32, #tpu.memory_space<vmem>>, vector<1x1x256xf32>
    tpu.vector_store %arg6[%c0_15, %c0_16, %c0_17], %30 {strides = array<i32>} : memref<1x1x256xf32, #tpu.memory_space<vmem>>, vector<1x1x256xf32>,
    %c0_i32_18 = arith.constant 0 : i32
    %32 = arith.cmpi eq, %arg1, %c0_i32_18 : i32
    %33 = arith.extui %32 : i1 to i32
    %c0_i32_19 = arith.constant 0 : i32
    %34 = arith.cmpi ne, %33, %c0_i32_19 : i32
    scf.if %34 {
      %c0_20 = arith.constant 0 : index
      %c0_21 = arith.constant 0 : index
      %c0_22 = arith.constant 0 : index
      %35 = vector.load %arg6[%c0_20, %c0_21, %c0_22] : memref<1x1x256xf32, #tpu.memory_space<vmem>>, vector<1x1x256xf32>
      %cst_23 = arith.constant 7.812500e-03 : f32
      %36 = vector.broadcast %cst_23 : f32 to vector<1x1x256xf32>
      %37 = arith.mulf %35, %36 : vector<1x1x256xf32>
      %c0_24 = arith.constant 0 : index
      %c0_25 = arith.constant 0 : index
      %c0_26 = arith.constant 0 : index
      %38 = vector.load %arg6[%c0_24, %c0_25, %c0_26] : memref<1x1x256xf32, #tpu.memory_space<vmem>>, vector<1x1x256xf32>
      tpu.vector_store %arg6[%c0_24, %c0_25, %c0_26], %37 {strides = array<i32>} : memref<1x1x256xf32, #tpu.memory_space<vmem>>, vector<1x1x256xf32>,
    } else {
    }
    return
  }
  func.func @transform_0(%arg0: i32, %arg1: i32, %arg2: memref<1xi32, #tpu.memory_space<smem>>) -> (i32, i32) {
    %c1_i32 = arith.constant 1 : i32
    %0 = arith.muli %arg0, %c1_i32 : i32
    %1 = arith.addi %0, %arg1 : i32
    %c0_i32 = arith.constant 0 : i32
    %c0_i32_0 = arith.constant 0 : i32
    return %1, %c0_i32 : i32, i32
  }
  func.func @transform_1(%arg0: i32, %arg1: i32, %arg2: memref<1xi32, #tpu.memory_space<smem>>) -> (i32, i32) {
    %c0_i32 = arith.constant 0 : i32
    %c0_i32_0 = arith.constant 0 : i32
    %c0_i32_1 = arith.constant 0 : i32
    return %c0_i32, %c0_i32_0 : i32, i32
  }
  func.func @transform_2(%arg0: i32, %arg1: i32, %arg2: memref<1xi32, #tpu.memory_space<smem>>) -> (i32, i32) {
    %c0_i32 = arith.constant 0 : i32
    %c0_i32_0 = arith.constant 0 : i32
    %c0_i32_1 = arith.constant 0 : i32
    return %c0_i32, %c0_i32_0 : i32, i32
  }
  func.func @transform_3(%arg0: i32, %arg1: i32, %arg2: memref<1xi32, #tpu.memory_space<smem>>) -> (i32, i32, i32) {
    %c0_i32 = arith.constant 0 : i32
    %c0_i32_0 = arith.constant 0 : i32
    %c0_i32_1 = arith.constant 0 : i32
    return %arg0, %c0_i32, %c0_i32_0 : i32, i32, i32
  }
}

</mosaic_0001>

<llo_original>
// kernel: tpu_custom_call.1
$region0: #{tpu_custom_call.1}
  #allocation0 [shape = 'u32[]', space=smem, size = 0x4, offset = 0x4, fixed_abs, tag = 'smem constant byte address 0x4 - core index']
  #allocation1 [shape = 'u32[144,128]{1,0:T(1,128)}', space=vmem, size = 0x12000, scoped, tag = 'internal scratch']
  #allocation2 [shape = 's32[1]{0}', space=sflag, size = 0x4, scoped, tag = 'scoped memory for tpu_custom_call.1']
  #allocation3 [shape = 's32[1]{0:T(128)S(6)}', space=smem, size = 0x200, scoped, tag = 'prefetched SMEM operand 0']
  %s0 = inlined_call_operand.<no memory space> [shape: s32[1], index: 0, kind: input, shape index: {}]
  %s1 = inlined_call_operand.hbm [shape: bf16[256,256], index: 1, kind: input, shape index: {}]
  %s2 = inlined_call_operand.hbm [shape: bf16[256,128], index: 2, kind: input, shape index: {}]
  %s3 = inlined_call_operand.vmem [shape: f32[1,128], index: 3, kind: input, shape index: {}]
  %s4 = inlined_call_operand.hbm [shape: f32[2,1,256], index: 4, kind: output, shape index: {}]
  %s5 = sld [smem:[#allocation0]]
  $region61: #{tpu_custom_call.1} parent=0
    _
  %s7 = ssub.s32 1, %s5
  %s8 = scalar_select 0, %s7, %s5
  %9 = sst [smem:[#allocation3]] %s0
  $region1: #{tpu_custom_call.1} parent=0
    #allocation4 [shape = 'u8[131072]{0}', space=vmem, size = 0x20000, scoped, tag = 'input window, operand 1']
    #allocation5 [shape = 's32[2]{0}', space=sflag, size = 0x8, scoped, tag = 'scoped memory for tpu_custom_call.1']
    #allocation6 [shape = 's32[2]{0}', space=sflag, size = 0x8, scoped, tag = 'scoped memory for tpu_custom_call.1']
    #allocation7 [shape = 'u8[65536]{0}', space=vmem, size = 0x10000, scoped, tag = 'input window, operand 2, single buffered']
    #allocation8 [shape = 's32[1]{0}', space=sflag, size = 0x4, scoped, tag = 'scoped memory for tpu_custom_call.1']
    #allocation9 [shape = 'u8[2048]{0}', space=vmem, size = 0x800, scoped, tag = 'output window, operand 0']
    %10 = vsyncpa [#allocation5], 0
    %s11 = scalar_lea.sflag [#allocation5], 1
    %12 = vsyncpa %s11, 0
    %13 = vsyncpa [#allocation8], 0
    %14 = vsyncpa [#allocation6], 0
    %s15 = scalar_lea.sflag [#allocation6], 1
    %16 = vsyncpa %s15, 0
    loop: start=0, step=1, limit=4
    $region2: #{tpu_custom_call.1} parent=1 // loop_pre_header
      _
    $region3: #{tpu_custom_call.1} parent=1 // loop_header
      %s18 = sphi 0, %s22
      %p19 = scmp.ge.s32.totalorder %s18, 4
      %s25 = sphi 0, %s37
      %s26 = sphi 0, %s33
      %s27 = sphi 0, %s25
      %s28 = sphi 0, %s26
      %s29 = sphi 0, %s27
      %s30 = sphi 0, %s28
      %s42 = sphi 0, %s44
      %s45 = sphi 0, %s42
      %s46 = sphi 0, %s45
      %s62 = sphi 0, %s46
      %s66 = sphi 0, %s66
      %s68 = sphi 0, %s66
      %s69 = sphi 0, %s68
      %s83 = sphi 0, %s69
      %s87 = sphi 0, %s87
      %s89 = sphi 0, %s87
      %s90 = sphi 0, %s89
      %s104 = sphi 0, %s90
      %s110 = sphi 0, %s112
      %s113 = sphi 0, %s110
      %s114 = sphi 0, %s113
      %s130 = sphi 0, %s114
    $region4: #{tpu_custom_call.1} parent=1 // loop_header_branch
      %21 = sbr.rel (%p19) target = $region8
    $region5: #{tpu_custom_call.1} parent=1 // loop_body
      %s23 = ssub.s32 %s18, 1
      %s24 = ssub.s32 %s18, 2
      %s31 = sadd.s32 1, %s26
      %p32 = scmp.ge.s32.totalorder %s31, 1
      %s33 = scalar_select %p32, 0, %s31
      %s34 = sadd.s32 1, %s25
      %s35 = scalar_select %p32, %s34, %s25
      %p36 = scmp.ge.s32.totalorder %s35, 2
      %s37 = scalar_select %p36, 0, %s35
      %s38 = sadd.s32 %s25, %s26
      %s39 = sadd.s32 %s37, %s33
      %s40 = ssub.s32 %s38, %s39
      %p41 = scmp.eq.s32.totalorder %s40, 0
      %s43 = sadd.s32 %s42, 1
      %s44 = scalar_select %p41, %s42, %s43
      %p47 = pneg %p41
      %p48 = scmp.eq.s32.totalorder %s18, 1
      %p49 = por %p47, %p48
      %p50 = scmp.ne.s32.totalorder %s42, %s45
      %p51 = scmp.eq.s32.totalorder %s18, 0
      %p52 = por %p50, %p51
      %p53 = scmp.ne.s32.totalorder %s42, %s45
      %p54 = scmp.eq.s32.totalorder %s23, 1
      %p55 = por %p53, %p54
      %p56 = scmp.ne.s32.totalorder %s45, %s46
      %p57 = scmp.eq.s32.totalorder %s23, 0
      %p58 = por %p56, %p57
      %p59 = scmp.ne.s32.totalorder %s45, %s46
      %p60 = scmp.eq.s32.totalorder %s24, 1
      %p61 = por %p59, %p60
      %p63 = scmp.ne.s32.totalorder %s46, %s62
      %p64 = scmp.eq.s32.totalorder %s24, 0
      %p65 = por %p63, %p64
      %s67 = sadd.s32 %s66, 1
      %p70 = scmp.eq.s32.totalorder %s18, 1
      %p71 = scmp.ne.s32.totalorder %s66, %s68
      %p72 = scmp.eq.s32.totalorder %s18, 0
      %p73 = por %p71, %p72
      %p74 = scmp.ne.s32.totalorder %s66, %s68
      %p75 = scmp.eq.s32.totalorder %s23, 1
      %p76 = por %p74, %p75
      %p77 = scmp.ne.s32.totalorder %s68, %s69
      %p78 = scmp.eq.s32.totalorder %s23, 0
      %p79 = por %p77, %p78
      %p80 = scmp.ne.s32.totalorder %s68, %s69
      %p81 = scmp.eq.s32.totalorder %s24, 1
      %p82 = por %p80, %p81
      %p84 = scmp.ne.s32.totalorder %s69, %s83
      %p85 = scmp.eq.s32.totalorder %s24, 0
      %p86 = por %p84, %p85
      %s88 = sadd.s32 %s87, 1
      %p91 = scmp.eq.s32.totalorder %s18, 1
      %p92 = scmp.ne.s32.totalorder %s87, %s89
      %p93 = scmp.eq.s32.totalorder %s18, 0
      %p94 = por %p92, %p93
      %p95 = scmp.ne.s32.totalorder %s87, %s89
      %p96 = scmp.eq.s32.totalorder %s23, 1
      %p97 = por %p95, %p96
      %p98 = scmp.ne.s32.totalorder %s89, %s90
      %p99 = scmp.eq.s32.totalorder %s23, 0
      %p100 = por %p98, %p99
      %p101 = scmp.ne.s32.totalorder %s89, %s90
      %p102 = scmp.eq.s32.totalorder %s24, 1
      %p103 = por %p101, %p102
      %p105 = scmp.ne.s32.totalorder %s90, %s104
      %p106 = scmp.eq.s32.totalorder %s24, 0
      %p107 = por %p105, %p106
      %s108 = ssub.s32 %s25, %s37
      %p109 = scmp.eq.s32.totalorder %s108, 0
      %s111 = sadd.s32 %s110, 1
      %s112 = scalar_select %p109, %s110, %s111
      %p115 = pneg %p109
      %p116 = scmp.eq.s32.totalorder %s18, 1
      %p117 = por %p115, %p116
      %p118 = scmp.ne.s32.totalorder %s110, %s113
      %p119 = scmp.eq.s32.totalorder %s18, 0
      %p120 = por %p118, %p119
      %p121 = scmp.ne.s32.totalorder %s110, %s113
      %p122 = scmp.eq.s32.totalorder %s23, 1
      %p123 = por %p121, %p122
      %p124 = scmp.ne.s32.totalorder %s113, %s114
      %p125 = scmp.eq.s32.totalorder %s23, 0
      %p126 = por %p124, %p125
      %p127 = scmp.ne.s32.totalorder %s113, %s114
      %p128 = scmp.eq.s32.totalorder %s24, 1
      %p129 = por %p127, %p128
      %p131 = scmp.ne.s32.totalorder %s114, %s130
      %p132 = scmp.eq.s32.totalorder %s24, 0
      %p133 = por %p131, %p132
      %p134 = scmp.le.s32.totalorder 1, %s18
      %p135 = scmp.lt.s32.totalorder %s18, 3
      %p136 = pnand %p134, %p135
      %p137 = pneg %p136
      // Predicated region
      $region9: #{tpu_custom_call.1} parent=5 // pred_check
        _
      $region10: #{tpu_custom_call.1} parent=5 // pred_check_branch
        %139 = sbr.rel (%p136) target = $region12
      $region11: #{tpu_custom_call.1} parent=5 // pred_region
        %s140 = ssub.s32 %s18, 1
        // Predicated region
        $region13: #{tpu_custom_call.1} parent=11 // pred_check
          %p141 = pneg %p79
        $region14: #{tpu_custom_call.1} parent=11 // pred_check_branch
          %143 = sbr.rel (%p141) target = $region16
        $region15: #{tpu_custom_call.1} parent=11 // pred_region
          %s145 = ssub.s32 2048, 2048
          %146 = vsyncadd [#allocation8], %s145
          %s147 = sshll.u32 [#allocation7], 4
          %s148 = int_to_ptr.vmem [resolvable:$true] %s147
          %153 = dma.hbm_to_vmem [thread:$0]  %s2, 2048, %s148, [#allocation8], 64, 64, 4
        $region16: #{tpu_custom_call.1} parent=11 // pred_fallthru
          _
        // Predicated region
        $region17: #{tpu_custom_call.1} parent=11 // pred_check
          %p154 = pneg %p100
        $region18: #{tpu_custom_call.1} parent=11 // pred_check_branch
          %156 = sbr.rel (%p154) target = $region20
        $region19: #{tpu_custom_call.1} parent=11 // pred_region
          _
        $region20: #{tpu_custom_call.1} parent=11 // pred_fallthru
          _
      $region12: #{tpu_custom_call.1} parent=5 // pred_fallthru
        _
      %p157 = scmp.lt.s32.totalorder %s18, 2
      // Predicated region
      $region21: #{tpu_custom_call.1} parent=5 // pred_check
        %p158 = pneg %p157
      $region22: #{tpu_custom_call.1} parent=5 // pred_check_branch
        %160 = sbr.rel (%p158) target = $region24
      $region23: #{tpu_custom_call.1} parent=5 // pred_region
        // Predicated region
        $region25: #{tpu_custom_call.1} parent=23 // pred_check
          %p161 = pneg %p52
        $region26: #{tpu_custom_call.1} parent=23 // pred_check_branch
          %163 = sbr.rel (%p161) target = $region28
        $region27: #{tpu_custom_call.1} parent=23 // pred_region
          %s164 = sand.u32 %s42, 1
          %s165 = scalar_lea.sflag [#allocation5], %s164
          %s166 = sand.u32 %s42, 1
          %s167 = smul.addr %s166, 128
          %s168 = scalar_lea.vmem [#allocation4], %s167
          %s169 = sadd.s32 %s25, %s26
          %s170 = smul.u32 16, %s169
          %s172 = ssub.s32 2048, 2048
          %173 = vsyncadd %s165, %s172
          %s174 = smul.addr %s170, 2
          %s175 = smul.addr %s174, 64
          %s176 = scalar_lea.hbm %s1, %s175
          %s177 = sshll.u32 %s168, 4
          %s178 = int_to_ptr.vmem [resolvable:$true] %s177
          %183 = dma.hbm_to_vmem [thread:$0]  %s176, 2048, %s178, %s165, 128, 128, 8
        $region28: #{tpu_custom_call.1} parent=23 // pred_fallthru
          _
      $region24: #{tpu_custom_call.1} parent=5 // pred_fallthru
        _
      %p184 = scmp.le.s32.totalorder 1, %s18
      %p185 = scmp.lt.s32.totalorder %s18, 3
      %p186 = pnand %p184, %p185
      %p187 = pneg %p186
      // Predicated region
      $region29: #{tpu_custom_call.1} parent=5 // pred_check
        _
      $region30: #{tpu_custom_call.1} parent=5 // pred_check_branch
        %189 = sbr.rel (%p186) target = $region32
      $region31: #{tpu_custom_call.1} parent=5 // pred_region
        %s190 = ssub.s32 %s18, 1
        %s191 = sand.u32 %s45, 1
        %s192 = scalar_lea.sflag [#allocation5], %s191
        %s193 = sand.u32 %s45, 1
        %s194 = smul.addr %s193, 128
        %s195 = scalar_lea.vmem [#allocation4], %s194
        // Predicated region
        $region33: #{tpu_custom_call.1} parent=31 // pred_check
          %p196 = pneg %p58
        $region34: #{tpu_custom_call.1} parent=31 // pred_check_branch
          %198 = sbr.rel (%p196) target = $region36
        $region35: #{tpu_custom_call.1} parent=31 // pred_region
          %199 = dma.done %s192, 2048
        $region36: #{tpu_custom_call.1} parent=31 // pred_fallthru
          _
        // Predicated region
        $region37: #{tpu_custom_call.1} parent=31 // pred_check
          %p200 = pneg %p79
        $region38: #{tpu_custom_call.1} parent=31 // pred_check_branch
          %202 = sbr.rel (%p200) target = $region40
        $region39: #{tpu_custom_call.1} parent=31 // pred_region
          %203 = dma.done [#allocation8], 2048
        $region40: #{tpu_custom_call.1} parent=31 // pred_fallthru
          _
        %s204 = sand.u32 %s45, 1
        %s205 = scalar_lea.sflag [#allocation5], %s204
        %s206 = sand.u32 %s45, 1
        %s207 = smul.addr %s206, 128
        %s208 = scalar_lea.vmem [#allocation4], %s207
        %p209 = pneg %p58
        %p210 = pneg %p55
        %p211 = pneg %p79
        %p212 = pneg %p76
        %p213 = pneg %p100
        %p214 = pneg %p97
        %p215 = pneg %p126
        %p216 = pneg %p123
        %s217 = sand.u32 %s113, 1
        %s218 = scalar_lea.sflag [#allocation6], %s217
        %s219 = sand.u32 %s113, 1
        %s220 = smul.addr %s219, 2
        %s221 = scalar_lea.vmem [#allocation9], %s220
        %s222 = sadd.s32 %s27, %s28
        %s223 = smul.u32 16, %s222
        %p225 = scmp.eq.s32.totalorder %s28, 0
        // Predicated region
        $region41: #{tpu_custom_call.1} parent=31 // pred_check
          %p226 = pneg %p225
        $region42: #{tpu_custom_call.1} parent=31 // pred_check_branch
          %228 = sbr.rel (%p226) target = $region44
        $region43: #{tpu_custom_call.1} parent=31 // pred_region
          %v229 = vlaneseq
          %vm230 = vcmp.ge.s32.totalorder %v229, 0
          %vm231 = vcmp.lt.s32.totalorder %v229, 256
          %vm232 = vmand %vm230, %vm231
          %233 = vst.msk [vmem:[%s221] sm:$0x3] %vm232, 0.0
        $region44: #{tpu_custom_call.1} parent=31 // pred_fallthru
          _
        %v234 = vld [vmem:[%s195] sm:$0xff]
        %v235 = vld [vmem:[%s195 + $0x8] sm:$0xff]
        %v236 = vld [vmem:[%s195 + $0x10] sm:$0xff]
        %v237 = vld [vmem:[%s195 + $0x18] sm:$0xff]
        %v238 = vld [vmem:[%s195 + $0x20] sm:$0xff]
        %v239 = vld [vmem:[%s195 + $0x28] sm:$0xff]
        %v240 = vld [vmem:[%s195 + $0x30] sm:$0xff]
        %v241 = vld [vmem:[%s195 + $0x38] sm:$0xff]
        %v242 = vld [vmem:[%s195 + $0x40] sm:$0xff]
        %v243 = vld [vmem:[%s195 + $0x48] sm:$0xff]
        %v244 = vld [vmem:[%s195 + $0x50] sm:$0xff]
        %v245 = vld [vmem:[%s195 + $0x58] sm:$0xff]
        %v246 = vld [vmem:[%s195 + $0x60] sm:$0xff]
        %v247 = vld [vmem:[%s195 + $0x68] sm:$0xff]
        %v248 = vld [vmem:[%s195 + $0x70] sm:$0xff]
        %v249 = vld [vmem:[%s195 + $0x78] sm:$0xff]
        %v250 = vld [vmem:[#allocation7] sm:$0xf]
        %v251 = vld [vmem:[#allocation7 + $0x4] sm:$0xf]
        %v252 = vld [vmem:[#allocation7 + $0x8] sm:$0xf]
        %v253 = vld [vmem:[#allocation7 + $0xc] sm:$0xf]
        %v254 = vld [vmem:[#allocation7 + $0x10] sm:$0xf]
        %v255 = vld [vmem:[#allocation7 + $0x14] sm:$0xf]
        %v256 = vld [vmem:[#allocation7 + $0x18] sm:$0xf]
        %v257 = vld [vmem:[#allocation7 + $0x1c] sm:$0xf]
        %v258 = vld [vmem:[#allocation7 + $0x20] sm:$0xf]
        %v259 = vld [vmem:[#allocation7 + $0x24] sm:$0xf]
        %v260 = vld [vmem:[#allocation7 + $0x28] sm:$0xf]
        %v261 = vld [vmem:[#allocation7 + $0x2c] sm:$0xf]
        %v262 = vld [vmem:[#allocation7 + $0x30] sm:$0xf]
        %v263 = vld [vmem:[#allocation7 + $0x34] sm:$0xf]
        %v264 = vld [vmem:[#allocation7 + $0x38] sm:$0xf]
        %v265 = vld [vmem:[#allocation7 + $0x3c] sm:$0xf]
        %v266 = vld [vmem:[#allocation7 + $0x40] sm:$0xf]
        %v267 = vld [vmem:[#allocation7 + $0x44] sm:$0xf]
        %v268 = vld [vmem:[#allocation7 + $0x48] sm:$0xf]
        %v269 = vld [vmem:[#allocation7 + $0x4c] sm:$0xf]
        %v270 = vld [vmem:[#allocation7 + $0x50] sm:$0xf]
        %v271 = vld [vmem:[#allocation7 + $0x54] sm:$0xf]
        %v272 = vld [vmem:[#allocation7 + $0x58] sm:$0xf]
        %v273 = vld [vmem:[#allocation7 + $0x5c] sm:$0xf]
        %v274 = vld [vmem:[#allocation7 + $0x60] sm:$0xf]
        %v275 = vld [vmem:[#allocation7 + $0x64] sm:$0xf]
        %v276 = vld [vmem:[#allocation7 + $0x68] sm:$0xf]
        %v277 = vld [vmem:[#allocation7 + $0x6c] sm:$0xf]
        %v278 = vld [vmem:[#allocation7 + $0x70] sm:$0xf]
        %v279 = vld [vmem:[#allocation7 + $0x74] sm:$0xf]
        %v280 = vld [vmem:[#allocation7 + $0x78] sm:$0xf]
        %v281 = vld [vmem:[#allocation7 + $0x7c] sm:$0xf]
        %v282 = vld [vmem:[%s3] sm:$0x1]
        %v284 = vlaneseq
        %v285 = vshrl.u32 %v284, 7
        %v286 = vsub.s32 0, %v285
        %v287 = vrot.slane %v282, %v286
        %v305 = vunpack.c.l.b16 %v234
        %v306 = vunpack.c.h.b16 %v234
        %v307 = vunpack.c.l.b16 %v235
        %v308 = vunpack.c.h.b16 %v235
        %v309 = vunpack.c.l.b16 %v236
        %v310 = vunpack.c.h.b16 %v236
        %v311 = vunpack.c.l.b16 %v237
        %v312 = vunpack.c.h.b16 %v237
        %v313 = vunpack.c.l.b16 %v238
        %v314 = vunpack.c.h.b16 %v238
        %v315 = vunpack.c.l.b16 %v239
        %v316 = vunpack.c.h.b16 %v239
        %v317 = vunpack.c.l.b16 %v240
        %v318 = vunpack.c.h.b16 %v240
        %v319 = vunpack.c.l.b16 %v241
        %v320 = vunpack.c.h.b16 %v241
        %v321 = vunpack.c.l.b16 %v242
        %v322 = vunpack.c.h.b16 %v242
        %v323 = vunpack.c.l.b16 %v243
        %v324 = vunpack.c.h.b16 %v243
        %v325 = vunpack.c.l.b16 %v244
        %v326 = vunpack.c.h.b16 %v244
        %v327 = vunpack.c.l.b16 %v245
        %v328 = vunpack.c.h.b16 %v245
        %v329 = vunpack.c.l.b16 %v246
        %v330 = vunpack.c.h.b16 %v246
        %v331 = vunpack.c.l.b16 %v247
        %v332 = vunpack.c.h.b16 %v247
        %v333 = vunpack.c.l.b16 %v248
        %v334 = vunpack.c.h.b16 %v248
        %v335 = vunpack.c.l.b16 %v249
        %v336 = vunpack.c.h.b16 %v249
        %v337 = vpack.c.b16 %v307, %v305
        %v338 = vpack.c.b16 %v308, %v306
        %v339 = vpack.c.b16 %v311, %v309
        %v340 = vpack.c.b16 %v312, %v310
        %v341 = vpack.c.b16 %v315, %v313
        %v342 = vpack.c.b16 %v316, %v314
        %v343 = vpack.c.b16 %v319, %v317
        %v344 = vpack.c.b16 %v320, %v318
        %v345 = vpack.c.b16 %v323, %v321
        %v346 = vpack.c.b16 %v324, %v322
        %v347 = vpack.c.b16 %v327, %v325
        %v348 = vpack.c.b16 %v328, %v326
        %v349 = vpack.c.b16 %v331, %v329
        %v350 = vpack.c.b16 %v332, %v330
        %v351 = vpack.c.b16 %v335, %v333
        %v352 = vpack.c.b16 %v336, %v334
        %v401 = vunpack.c.l.b16 %v250
        %v402 = vunpack.c.l.b16 %v251
        %v403 = vunpack.c.l.b16 %v252
        %v404 = vunpack.c.l.b16 %v253
        %v405 = vunpack.c.l.b16 %v254
        %v406 = vunpack.c.l.b16 %v255
        %v407 = vunpack.c.l.b16 %v256
        %v408 = vunpack.c.l.b16 %v257
        %v409 = vunpack.c.l.b16 %v258
        %v410 = vunpack.c.l.b16 %v259
        %v411 = vunpack.c.l.b16 %v260
        %v412 = vunpack.c.l.b16 %v261
        %v413 = vunpack.c.l.b16 %v262
        %v414 = vunpack.c.l.b16 %v263
        %v415 = vunpack.c.l.b16 %v264
        %v416 = vunpack.c.l.b16 %v265
        %v417 = vunpack.c.l.b16 %v266
        %v418 = vunpack.c.l.b16 %v267
        %v419 = vunpack.c.l.b16 %v268
        %v420 = vunpack.c.l.b16 %v269
        %v421 = vunpack.c.l.b16 %v270
        %v422 = vunpack.c.l.b16 %v271
        %v423 = vunpack.c.l.b16 %v272
        %v424 = vunpack.c.l.b16 %v273
        %v425 = vunpack.c.l.b16 %v274
        %v426 = vunpack.c.l.b16 %v275
        %v427 = vunpack.c.l.b16 %v276
        %v428 = vunpack.c.l.b16 %v277
        %v429 = vunpack.c.l.b16 %v278
        %v430 = vunpack.c.l.b16 %v279
        %v431 = vunpack.c.l.b16 %v280
        %v432 = vunpack.c.l.b16 %v281
        %v433 = vpack.c.b16 %v402, %v401
        %v434 = vpack.c.b16 %v404, %v403
        %v435 = vpack.c.b16 %v406, %v405
        %v436 = vpack.c.b16 %v408, %v407
        %v437 = vpack.c.b16 %v410, %v409
        %v438 = vpack.c.b16 %v412, %v411
        %v439 = vpack.c.b16 %v414, %v413
        %v440 = vpack.c.b16 %v416, %v415
        %v441 = vpack.c.b16 %v418, %v417
        %v442 = vpack.c.b16 %v420, %v419
        %v443 = vpack.c.b16 %v422, %v421
        %v444 = vpack.c.b16 %v424, %v423
        %v445 = vpack.c.b16 %v426, %v425
        %v446 = vpack.c.b16 %v428, %v427
        %v447 = vpack.c.b16 %v430, %v429
        %v448 = vpack.c.b16 %v432, %v431
        %465 = vmatprep.subr.bf16.mxu0 0
        %466 = vmatpush1.bf16.msra.mxu0 %v433
        %467 = vmatprep.subr.bf16.mxu0 0
        %468 = vmatpush1.bf16.msra.mxu0 %v434
        %469 = vmatprep.subr.bf16.mxu0 0
        %470 = vmatpush1.bf16.msra.mxu0 %v435
        %471 = vmatprep.subr.bf16.mxu0 0
        %472 = vmatpush1.bf16.msra.mxu0 %v436
        %473 = vmatprep.subr.bf16.mxu0 0
        %474 = vmatpush1.bf16.msra.mxu0 %v437
        %475 = vmatprep.subr.bf16.mxu0 0
        %476 = vmatpush1.bf16.msra.mxu0 %v438
        %477 = vmatprep.subr.bf16.mxu0 0
        %478 = vmatpush1.bf16.msra.mxu0 %v439
        %479 = vmatprep.subr.bf16.mxu0 0
        %480 = vmatpush1.bf16.msra.mxu0 %v440
        %481 = vmatprep.subr.bf16.mxu0 0
        %482 = vmatpush1.bf16.msra.mxu0 %v441
        %483 = vmatprep.subr.bf16.mxu0 0
        %484 = vmatpush1.bf16.msra.mxu0 %v442
        %485 = vmatprep.subr.bf16.mxu0 0
        %486 = vmatpush1.bf16.msra.mxu0 %v443
        %487 = vmatprep.subr.bf16.mxu0 0
        %488 = vmatpush1.bf16.msra.mxu0 %v444
        %489 = vmatprep.subr.bf16.mxu0 0
        %490 = vmatpush1.bf16.msra.mxu0 %v445
        %491 = vmatprep.subr.bf16.mxu0 0
        %492 = vmatpush1.bf16.msra.mxu0 %v446
        %493 = vmatprep.subr.bf16.mxu0 0
        %494 = vmatpush1.bf16.msra.mxu0 %v447
        %495 = vmatprep.subr.bf16.mxu0 0
        %496 = vmatpush1.bf16.msra.mxu0 %v448
        %497 = vmatprep.mubr.bf16.mxu0 %v338
        %498 = vmatmul.mubr.bf16.gmra.mrb[0].mxu0 %v337
        %v499 = vpop.f32.mrb[0].mxu0
        %v500 = vadd.f32 %v287, %v499
        %v501 = vpop.f32.mrb[0].mxu0
        %v502 = vpop.f32.mrb[0].mxu0
        %v503 = vadd.f32 %v287, %v502
        %v504 = vpop.f32.mrb[0].mxu0
        %505 = vmatprep.mubr.bf16.mxu0 %v340
        %506 = vmatmul.mubr.bf16.gmra.mrb[0].mxu0 %v339
        %v507 = vpop.f32.mrb[0].mxu0
        %v508 = vadd.f32 %v287, %v507
        %v509 = vpop.f32.mrb[0].mxu0
        %v510 = vpop.f32.mrb[0].mxu0
        %v511 = vadd.f32 %v287, %v510
        %v512 = vpop.f32.mrb[0].mxu0
        %513 = vmatprep.mubr.bf16.mxu0 %v342
        %514 = vmatmul.mubr.bf16.gmra.mrb[0].mxu0 %v341
        %v515 = vpop.f32.mrb[0].mxu0
        %v516 = vadd.f32 %v287, %v515
        %v517 = vpop.f32.mrb[0].mxu0
        %v518 = vpop.f32.mrb[0].mxu0
        %v519 = vadd.f32 %v287, %v518
        %v520 = vpop.f32.mrb[0].mxu0
        %521 = vmatprep.mubr.bf16.mxu0 %v344
        %522 = vmatmul.mubr.bf16.gmra.mrb[0].mxu0 %v343
        %v523 = vpop.f32.mrb[0].mxu0
        %v524 = vadd.f32 %v287, %v523
        %v525 = vpop.f32.mrb[0].mxu0
        %v526 = vpop.f32.mrb[0].mxu0
        %v527 = vadd.f32 %v287, %v526
        %v528 = vpop.f32.mrb[0].mxu0
        %529 = vmatprep.mubr.bf16.mxu0 %v346
        %530 = vmatmul.mubr.bf16.gmra.mrb[0].mxu0 %v345
        %v531 = vpop.f32.mrb[0].mxu0
        %v532 = vadd.f32 %v287, %v531
        %v533 = vpop.f32.mrb[0].mxu0
        %v534 = vpop.f32.mrb[0].mxu0
        %v535 = vadd.f32 %v287, %v534
        %v536 = vpop.f32.mrb[0].mxu0
        %537 = vmatprep.mubr.bf16.mxu0 %v348
        %538 = vmatmul.mubr.bf16.gmra.mrb[0].mxu0 %v347
        %v539 = vpop.f32.mrb[0].mxu0
        %v540 = vadd.f32 %v287, %v539
        %v541 = vpop.f32.mrb[0].mxu0
        %v542 = vpop.f32.mrb[0].mxu0
        %v543 = vadd.f32 %v287, %v542
        %v544 = vpop.f32.mrb[0].mxu0
        %545 = vmatprep.mubr.bf16.mxu0 %v350
        %546 = vmatmul.mubr.bf16.gmra.mrb[0].mxu0 %v349
        %v547 = vpop.f32.mrb[0].mxu0
        %v548 = vadd.f32 %v287, %v547
        %v549 = vpop.f32.mrb[0].mxu0
        %v550 = vpop.f32.mrb[0].mxu0
        %v551 = vadd.f32 %v287, %v550
        %v552 = vpop.f32.mrb[0].mxu0
        %553 = vmatprep.mubr.bf16.mxu0 %v352
        %554 = vmatmul.mubr.bf16.gmra.mrb[0].mxu0 %v351
        %v555 = vpop.f32.mrb[0].mxu0
        %v556 = vadd.f32 %v287, %v555
        %v557 = vpop.f32.mrb[0].mxu0
        %v558 = vpop.f32.mrb[0].mxu0
        %v559 = vadd.f32 %v287, %v558
        %v560 = vpop.f32.mrb[0].mxu0
        %561 = vdwg.mxu0
        %562 = vmax.xlane.f32.xlu0 %v500
        %v563 = vpop.xlane.xlu0 %562
        %564 = vmax.xlane.f32.xlu0 %v503
        %v565 = vpop.xlane.xlu0 %564
        %566 = vmax.xlane.f32.xlu0 %v508
        %v567 = vpop.xlane.xlu0 %566
        %568 = vmax.xlane.f32.xlu0 %v511
        %v569 = vpop.xlane.xlu0 %568
        %570 = vmax.xlane.f32.xlu0 %v516
        %v571 = vpop.xlane.xlu0 %570
        %572 = vmax.xlane.f32.xlu0 %v519
        %v573 = vpop.xlane.xlu0 %572
        %574 = vmax.xlane.f32.xlu0 %v524
        %v575 = vpop.xlane.xlu0 %574
        %576 = vmax.xlane.f32.xlu0 %v527
        %v577 = vpop.xlane.xlu0 %576
        %578 = vmax.xlane.f32.xlu0 %v532
        %v579 = vpop.xlane.xlu0 %578
        %580 = vmax.xlane.f32.xlu0 %v535
        %v581 = vpop.xlane.xlu0 %580
        %582 = vmax.xlane.f32.xlu0 %v540
        %v583 = vpop.xlane.xlu0 %582
        %584 = vmax.xlane.f32.xlu0 %v543
        %v585 = vpop.xlane.xlu0 %584
        %586 = vmax.xlane.f32.xlu0 %v548
        %v587 = vpop.xlane.xlu0 %586
        %588 = vmax.xlane.f32.xlu0 %v551
        %v589 = vpop.xlane.xlu0 %588
        %590 = vmax.xlane.f32.xlu0 %v556
        %v591 = vpop.xlane.xlu0 %590
        %592 = vmax.xlane.f32.xlu0 %v559
        %v593 = vpop.xlane.xlu0 %592
        %v594 = vsub.f32 %v500, %v563
        %v595 = vsub.f32 %v503, %v565
        %v596 = vsub.f32 %v508, %v567
        %v597 = vsub.f32 %v511, %v569
        %v598 = vsub.f32 %v516, %v571
        %v599 = vsub.f32 %v519, %v573
        %v600 = vsub.f32 %v524, %v575
        %v601 = vsub.f32 %v527, %v577
        %v602 = vsub.f32 %v532, %v579
        %v603 = vsub.f32 %v535, %v581
        %v604 = vsub.f32 %v540, %v583
        %v605 = vsub.f32 %v543, %v585
        %v606 = vsub.f32 %v548, %v587
        %v607 = vsub.f32 %v551, %v589
        %v608 = vsub.f32 %v556, %v591
        %v609 = vsub.f32 %v559, %v593
        %v610 = vmul.f32 %v594, 1.442695
        %v611 = vpow.pop %v610
        %v612 = vmul.f32 %v595, 1.442695
        %v613 = vpow.pop %v612
        %v614 = vmul.f32 %v596, 1.442695
        %v615 = vpow.pop %v614
        %v616 = vmul.f32 %v597, 1.442695
        %v617 = vpow.pop %v616
        %v618 = vmul.f32 %v598, 1.442695
        %v619 = vpow.pop %v618
        %v620 = vmul.f32 %v599, 1.442695
        %v621 = vpow.pop %v620
        %v622 = vmul.f32 %v600, 1.442695
        %v623 = vpow.pop %v622
        %v624 = vmul.f32 %v601, 1.442695
        %v625 = vpow.pop %v624
        %v626 = vmul.f32 %v602, 1.442695
        %v627 = vpow.pop %v626
        %v628 = vmul.f32 %v603, 1.442695
        %v629 = vpow.pop %v628
        %v630 = vmul.f32 %v604, 1.442695
        %v631 = vpow.pop %v630
        %v632 = vmul.f32 %v605, 1.442695
        %v633 = vpow.pop %v632
        %v634 = vmul.f32 %v606, 1.442695
        %v635 = vpow.pop %v634
        %v636 = vmul.f32 %v607, 1.442695
        %v637 = vpow.pop %v636
        %v638 = vmul.f32 %v608, 1.442695
        %v639 = vpow.pop %v638
        %v640 = vmul.f32 %v609, 1.442695
        %v641 = vpow.pop %v640
        %642 = vadd.xlane.f32.xlu0 %v611
        %v643 = vpop.xlane.xlu0 %642
        %644 = vadd.xlane.f32.xlu0 %v613
        %v645 = vpop.xlane.xlu0 %644
        %646 = vadd.xlane.f32.xlu0 %v615
        %v647 = vpop.xlane.xlu0 %646
        %648 = vadd.xlane.f32.xlu0 %v617
        %v649 = vpop.xlane.xlu0 %648
        %650 = vadd.xlane.f32.xlu0 %v619
        %v651 = vpop.xlane.xlu0 %650
        %652 = vadd.xlane.f32.xlu0 %v621
        %v653 = vpop.xlane.xlu0 %652
        %654 = vadd.xlane.f32.xlu0 %v623
        %v655 = vpop.xlane.xlu0 %654
        %656 = vadd.xlane.f32.xlu0 %v625
        %v657 = vpop.xlane.xlu0 %656
        %658 = vadd.xlane.f32.xlu0 %v627
        %v659 = vpop.xlane.xlu0 %658
        %660 = vadd.xlane.f32.xlu0 %v629
        %v661 = vpop.xlane.xlu0 %660
        %662 = vadd.xlane.f32.xlu0 %v631
        %v663 = vpop.xlane.xlu0 %662
        %664 = vadd.xlane.f32.xlu0 %v633
        %v665 = vpop.xlane.xlu0 %664
        %666 = vadd.xlane.f32.xlu0 %v635
        %v667 = vpop.xlane.xlu0 %666
        %668 = vadd.xlane.f32.xlu0 %v637
        %v669 = vpop.xlane.xlu0 %668
        %670 = vadd.xlane.f32.xlu0 %v639
        %v671 = vpop.xlane.xlu0 %670
        %672 = vadd.xlane.f32.xlu0 %v641
        %v673 = vpop.xlane.xlu0 %672
        %s674 = sld [smem:[#allocation3]]
        %v675 = vlaneseq
        %v676 = vand.u32 %v675, 127
        %v677 = vstv %s674
        %vm678 = vcmp.eq.s32.totalorder %v676, %v677
        %v679 = vsel %vm678, %v611, 0.0
        %v680 = vsel %vm678, %v613, 0.0
        %v681 = vsel %vm678, %v615, 0.0
        %v682 = vsel %vm678, %v617, 0.0
        %v683 = vsel %vm678, %v619, 0.0
        %v684 = vsel %vm678, %v621, 0.0
        %v685 = vsel %vm678, %v623, 0.0
        %v686 = vsel %vm678, %v625, 0.0
        %v687 = vsel %vm678, %v627, 0.0
        %v688 = vsel %vm678, %v629, 0.0
        %v689 = vsel %vm678, %v631, 0.0
        %v690 = vsel %vm678, %v633, 0.0
        %v691 = vsel %vm678, %v635, 0.0
        %v692 = vsel %vm678, %v637, 0.0
        %v693 = vsel %vm678, %v639, 0.0
        %v694 = vsel %vm678, %v641, 0.0
        %695 = vadd.xlane.f32.xlu0 %v679
        %v696 = vpop.xlane.xlu0 %695
        %697 = vadd.xlane.f32.xlu0 %v680
        %v698 = vpop.xlane.xlu0 %697
        %699 = vadd.xlane.f32.xlu0 %v681
        %v700 = vpop.xlane.xlu0 %699
        %701 = vadd.xlane.f32.xlu0 %v682
        %v702 = vpop.xlane.xlu0 %701
        %703 = vadd.xlane.f32.xlu0 %v683
        %v704 = vpop.xlane.xlu0 %703
        %705 = vadd.xlane.f32.xlu0 %v684
        %v706 = vpop.xlane.xlu0 %705
        %707 = vadd.xlane.f32.xlu0 %v685
        %v708 = vpop.xlane.xlu0 %707
        %709 = vadd.xlane.f32.xlu0 %v686
        %v710 = vpop.xlane.xlu0 %709
        %711 = vadd.xlane.f32.xlu0 %v687
        %v712 = vpop.xlane.xlu0 %711
        %713 = vadd.xlane.f32.xlu0 %v688
        %v714 = vpop.xlane.xlu0 %713
        %715 = vadd.xlane.f32.xlu0 %v689
        %v716 = vpop.xlane.xlu0 %715
        %717 = vadd.xlane.f32.xlu0 %v690
        %v718 = vpop.xlane.xlu0 %717
        %719 = vadd.xlane.f32.xlu0 %v691
        %v720 = vpop.xlane.xlu0 %719
        %721 = vadd.xlane.f32.xlu0 %v692
        %v722 = vpop.xlane.xlu0 %721
        %723 = vadd.xlane.f32.xlu0 %v693
        %v724 = vpop.xlane.xlu0 %723
        %725 = vadd.xlane.f32.xlu0 %v694
        %v726 = vpop.xlane.xlu0 %725
        %v727 = vrcp.pop %v643
        %v728 = vrcp.pop %v645
        %v729 = vrcp.pop %v647
        %v730 = vrcp.pop %v649
        %v731 = vrcp.pop %v651
        %v732 = vrcp.pop %v653
        %v733 = vrcp.pop %v655
        %v734 = vrcp.pop %v657
        %v735 = vrcp.pop %v659
        %v736 = vrcp.pop %v661
        %v737 = vrcp.pop %v663
        %v738 = vrcp.pop %v665
        %v739 = vrcp.pop %v667
        %v740 = vrcp.pop %v669
        %v741 = vrcp.pop %v671
        %v742 = vrcp.pop %v673
        %v743 = vmul.f32 %v696, %v727
        %v744 = vmul.f32 %v698, %v728
        %v745 = vmul.f32 %v700, %v729
        %v746 = vmul.f32 %v702, %v730
        %v747 = vmul.f32 %v704, %v731
        %v748 = vmul.f32 %v706, %v732
        %v749 = vmul.f32 %v708, %v733
        %v750 = vmul.f32 %v710, %v734
        %v751 = vmul.f32 %v712, %v735
        %v752 = vmul.f32 %v714, %v736
        %v753 = vmul.f32 %v716, %v737
        %v754 = vmul.f32 %v718, %v738
        %v755 = vmul.f32 %v720, %v739
        %v756 = vmul.f32 %v722, %v740
        %v757 = vmul.f32 %v724, %v741
        %v758 = vmul.f32 %v726, %v742
        %v759 = vpack.c.bf16 %v744, %v743
        %v760 = vpack.c.bf16 %v746, %v745
        %v761 = vpack.c.bf16 %v748, %v747
        %v762 = vpack.c.bf16 %v750, %v749
        %v763 = vpack.c.bf16 %v752, %v751
        %v764 = vpack.c.bf16 %v754, %v753
        %v765 = vpack.c.bf16 %v756, %v755
        %v766 = vpack.c.bf16 %v758, %v757
        %767 = vxpose.xlu0.c.b16.start [1/8] %v759, 128
        %768 = vxpose.xlu0.c.b16.cont [2/8] %v760, 128
        %769 = vxpose.xlu0.c.b16.cont [3/8] %v761, 128
        %770 = vxpose.xlu0.c.b16.cont [4/8] %v762, 128
        %771 = vxpose.xlu0.c.b16.cont [5/8] %v763, 128
        %772 = vxpose.xlu0.c.b16.cont [6/8] %v764, 128
        %773 = vxpose.xlu0.c.b16.cont [7/8] %v765, 128
        %774 = vxpose.xlu0.c.b16.end [8/8] %v766, 128
        %v775 = vpop.trf.xlu0
        %v776 = vpop.trf.xlu0
        %v777 = vpop.trf.xlu0
        %v778 = vpop.trf.xlu0
        %v779 = vpop.trf.xlu0
        %v780 = vpop.trf.xlu0
        %v781 = vpop.trf.xlu0
        %v782 = vpop.trf.xlu0
        %783 = vmatprep.subr.bf16.mxu0 %v338
        %784 = vmatpush1.bf16.msra.mxu0 %v337
        %785 = vmatprep.subr.bf16.mxu0 %v340
        %786 = vmatpush1.bf16.msra.mxu0 %v339
        %787 = vmatprep.subr.bf16.mxu0 %v342
        %788 = vmatpush1.bf16.msra.mxu0 %v341
        %789 = vmatprep.subr.bf16.mxu0 %v344
        %790 = vmatpush1.bf16.msra.mxu0 %v343
        %791 = vmatprep.subr.bf16.mxu0 %v346
        %792 = vmatpush1.bf16.msra.mxu0 %v345
        %793 = vmatprep.subr.bf16.mxu0 %v348
        %794 = vmatpush1.bf16.msra.mxu0 %v347
        %795 = vmatprep.subr.bf16.mxu0 %v350
        %796 = vmatpush1.bf16.msra.mxu0 %v349
        %797 = vmatprep.subr.bf16.mxu0 %v352
        %798 = vmatpush1.bf16.msra.mxu0 %v351
        %799 = vmatprep.subr.bf16.mxu0 0
        %800 = vmatpush1.bf16.msra.mxu0 0
        %801 = vmatprep.subr.bf16.mxu0 0
        %802 = vmatpush1.bf16.msra.mxu0 0
        %803 = vmatprep.subr.bf16.mxu0 0
        %804 = vmatpush1.bf16.msra.mxu0 0
        %805 = vmatprep.subr.bf16.mxu0 0
        %806 = vmatpush1.bf16.msra.mxu0 0
        %807 = vmatprep.subr.bf16.mxu0 0
        %808 = vmatpush1.bf16.msra.mxu0 0
        %809 = vmatprep.subr.bf16.mxu0 0
        %810 = vmatpush1.bf16.msra.mxu0 0
        %811 = vmatprep.subr.bf16.mxu0 0
        %812 = vmatpush1.bf16.msra.mxu0 0
        %813 = vmatprep.subr.bf16.mxu0 0
        %814 = vmatpush1.bf16.msra.mxu0 0
        %815 = vmatprep.mubr.bf16.mxu0 0
        %816 = vmatmul.mubr.bf16.gmra.mrb[0].mxu0 %v775
        %v817 = vpop.f32.mrb[0].mxu0
        %v818 = vadd.f32 0.0, %v817
        %v819 = vpop.f32.mrb[0].mxu0
        %v820 = vadd.f32 0.0, %v819
        %v821 = vpop.f32.mrb[0].mxu0
        %v822 = vpop.f32.mrb[0].mxu0
        %823 = vdwg.mxu0
        %v824 = vld [vmem:[%s221] sm:$0x3]
        %v827 = vcombine.low %v818, %v820
        %v829 = vunpack.c.l.s4 1966171168
        %v830 = vunpack.c.0.s8 %v829
        %v831 = vlaneseq
        %v832 = vshrl.u32 %v831, 7
        %v833 = vsub.s32 %v830, %v832
        %v834 = vrot.slane %v827, %v833
        %v836 = vunpack.c.l.s4 1966171168
        %v837 = vunpack.c.0.s8 %v836
        %v838 = vlaneseq
        %v839 = vshrl.u32 %v838, 7
        %v840 = vsub.s32 %v837, %v839
        %v841 = vrot.slane %v834, %v840
        %v843 = vadd.f32 %v824, %v841
        %v844 = vlaneseq
        %vm845 = vcmp.ge.s32.totalorder %v844, 0
        %vm846 = vcmp.lt.s32.totalorder %v844, 256
        %vm847 = vmand %vm845, %vm846
        %848 = vst.msk [vmem:[%s221] sm:$0x3] %vm847, %v843
        // Predicated region
        $region45: #{tpu_custom_call.1} parent=31 // pred_check
          %p849 = pneg %p225
        $region46: #{tpu_custom_call.1} parent=31 // pred_check_branch
          %851 = sbr.rel (%p849) target = $region48
        $region47: #{tpu_custom_call.1} parent=31 // pred_region
          %v852 = vld [vmem:[%s221] sm:$0x3]
          %v853 = vmul.f32 %v852, 0.0078125
          %854 = vst.msk [vmem:[%s221] sm:$0x3] %vm847, %v853
        $region48: #{tpu_custom_call.1} parent=31 // pred_fallthru
          _
        %s855 = sand.u32 %s113, 1
        %s856 = scalar_lea.sflag [#allocation6], %s855
        %s857 = sand.u32 %s113, 1
        %s858 = smul.addr %s857, 2
        %s859 = scalar_lea.vmem [#allocation9], %s858
        // Predicated region
        $region49: #{tpu_custom_call.1} parent=31 // pred_check
          %p860 = pneg %p123
        $region50: #{tpu_custom_call.1} parent=31 // pred_check_branch
          %862 = sbr.rel (%p860) target = $region52
        $region51: #{tpu_custom_call.1} parent=31 // pred_region
          %s864 = ssub.s32 32, 32
          %865 = vsyncadd %s856, %s864
          %s866 = smul.addr %s27, 2
          %s867 = smul.addr %s866, 16
          %s868 = scalar_lea.hbm %s4, %s867
          %s870 = sshll.u32 %s859, 4
          %s871 = int_to_ptr.vmem [resolvable:$true] %s870
          %873 = dma.vmem_to_hbm [thread:$0]  %s871, 32, %s868, %s856
        $region52: #{tpu_custom_call.1} parent=31 // pred_fallthru
          _
      $region32: #{tpu_custom_call.1} parent=5 // pred_fallthru
        _
      %p874 = scmp.le.s32.totalorder 2, %s18
      // Predicated region
      $region53: #{tpu_custom_call.1} parent=5 // pred_check
        %p875 = pneg %p874
      $region54: #{tpu_custom_call.1} parent=5 // pred_check_branch
        %877 = sbr.rel (%p875) target = $region56
      $region55: #{tpu_custom_call.1} parent=5 // pred_region
        %s878 = ssub.s32 %s18, 2
        // Predicated region
        $region57: #{tpu_custom_call.1} parent=55 // pred_check
          %p879 = pneg %p129
        $region58: #{tpu_custom_call.1} parent=55 // pred_check_branch
          %881 = sbr.rel (%p879) target = $region60
        $region59: #{tpu_custom_call.1} parent=55 // pred_region
          %s882 = sand.u32 %s114, 1
          %s883 = scalar_lea.sflag [#allocation6], %s882
          %s884 = sand.u32 %s114, 1
          %s885 = smul.addr %s884, 2
          %s886 = scalar_lea.vmem [#allocation9], %s885
          %887 = dma.done %s883, 32
        $region60: #{tpu_custom_call.1} parent=55 // pred_fallthru
          _
      $region56: #{tpu_custom_call.1} parent=5 // pred_fallthru
        _
    $region6: #{tpu_custom_call.1} parent=1 // loop_footer
      %s22 = sadd.s32 1, %s18
    $region7: #{tpu_custom_call.1} parent=1 // loop_footer_branch
      %17 = sbr.rel target = $region3
    $region8: #{tpu_custom_call.1} parent=1 // loop_exit
      _
    %888 = vsyncpa [#allocation5], 1
    %s889 = scalar_lea.sflag [#allocation5], 1
    %890 = vsyncpa %s889, 1
    %891 = vsyncpa [#allocation8], 1
    %892 = vsyncpa [#allocation6], 1
    %s893 = scalar_lea.sflag [#allocation6], 1
    %894 = vsyncpa %s893, 1

</llo_original>
